<compile_context>
chip_gen: v5e
topology: v5e:2x2
jax: 0.10.0
libtpu: 0.0.40
codegen_flags: <defaults>
</compile_context>

<pallas_src>
import math

import jax
import jax.numpy as jnp
from jax import lax
from jax.experimental import pallas as pl
from jax.experimental.pallas import tpu as pltpu


# ----------------------------------------------------------------------------
# VMEM planning (conservative across v5e / v6e / v7x)
# ----------------------------------------------------------------------------
_VMEM_LIMIT_BYTES = 32 << 20    # requested scoped VMEM (<= v7x 64 MiB physical)
_PLAN_BUDGET_BYTES = 24 << 20   # what the tile picker may consume
_W_STREAM_CAP_BYTES = 16 << 20  # cap on the (multi-)buffered weight stream


def _round_up(v, m):
    return (v + m - 1) // m * m


# ----------------------------------------------------------------------------
# Kernel
# ----------------------------------------------------------------------------
def noisy_linear_kernel(x_ref, w_ref, b_ref, o_ref, acc_ref):
    """One (n, k) grid step of  y = x @ W^T + b.

    x_ref  : [B_p, tk]  bf16   activation tile
    w_ref  : [tn, tk]   bf16   weight tile, PyTorch [out, in] layout (no transpose)
    b_ref  : [1, tn]    f32    bias tile
    o_ref  : [B_p, tn]  f32    output tile (lane-dense)
    acc_ref: [B_p, tn]  f32    VMEM accumulator, persistent over the k axis
    """
    k = pl.program_id(1)

    @pl.when(k == 0)
    def _():
        # Fold bias into the accumulator init (no separate epilogue add).
        acc_ref[...] = jnp.broadcast_to(
            b_ref[...].astype(jnp.float32), acc_ref.shape)

    # Contract the K axis of both operands -> MXU consumes W^T directly,
    # bf16 x bf16 inputs with f32 accumulation.
    acc_ref[...] += lax.dot_general(
        x_ref[...], w_ref[...],
        dimension_numbers=(((1,), (1,)), ((), ())),
        preferred_element_type=jnp.float32)

    @pl.when(k == pl.num_programs(1) - 1)
    def _():
        o_ref[...] = acc_ref[...].astype(o_ref.dtype)


# ----------------------------------------------------------------------------
# Tile selection: biggest tiles that fit the planning budget.
# ----------------------------------------------------------------------------
def _choose_tiles(b_pad, in_128, out_128, w_itemsize, x_itemsize, o_itemsize):
    # Prefer >=2 out-feature tiles (so the v7x megacore "parallel" axis feeds
    # both TensorCores) as long as a tile keeps >=512 lanes; otherwise a single
    # big tile amortizes the ~0.35us grid-step overhead best.
    tn_cap = 2048
    if out_128 >= 1024:
        tn_cap = min(tn_cap, max(512, _round_up((out_128 + 1) // 2, 128)))

    tn_cands = sorted({min(out_128, tn_cap, c)
                       for c in (2048, 1024, 512, 256, 128)}, reverse=True)
    # Prefer tk = full (128-rounded) K first: grid collapses to (N, 1), the
    # accumulator is never revisited and x is DMA'd exactly once.
    tk_cands = sorted({min(in_128, c)
                       for c in (in_128, 4096, 2048, 1024, 512, 256, 128)},
                      reverse=True)

    def fits(tn, tk):
        in_p = _round_up(in_128, tk)
        k_tiles = in_p // tk
        w_bufs = 3 if k_tiles > 1 else 2          # Buffered(3) when K axis live
        w_bytes = w_bufs * tn * tk * w_itemsize
        x_bytes = 2 * b_pad * tk * x_itemsize
        o_bytes = 2 * b_pad * tn * o_itemsize
        acc_bytes = b_pad * tn * 4
        bias_bytes = 2 * tn * 4
        total = w_bytes + x_bytes + o_bytes + acc_bytes + bias_bytes
        return w_bytes <= _W_STREAM_CAP_BYTES and total <= _PLAN_BUDGET_BYTES

    for tk in tk_cands:           # big tk first: no reduction revisits
        for tn in tn_cands:       # then big tn: fewer grid steps
            if fits(tn, tk):
                return tn, tk
    return 128, 128               # unreachable with the caps above, but safe


# ----------------------------------------------------------------------------
# Init-time packing (pad + cast W exactly once; never in the per-call path).
# ----------------------------------------------------------------------------
def prepare_noisy_linear(weight_mu, bias_mu, *, weight_dtype=jnp.bfloat16,
                         batch_hint=16):
    """weight_mu: [out, in] f32 (PyTorch layout), bias_mu: [out] f32.
    Pads to the chosen tile multiples and casts W to the streaming dtype once.
    Pass weight_dtype=jnp.float32 for bit-faithful PyTorch-f32 numerics."""
    out_f, in_f = weight_mu.shape
    x_dtype = weight_dtype                      # MXU input dtype for activations
    o_dtype = jnp.float32

    sub = 16 if weight_dtype == jnp.bfloat16 else 8
    b_pad = _round_up(max(int(batch_hint), 1), sub)
    in_128 = _round_up(in_f, 128)
    out_128 = _round_up(out_f, 128)

    tn, tk = _choose_tiles(b_pad, in_128, out_128,
                           jnp.dtype(weight_dtype).itemsize,
                           jnp.dtype(x_dtype).itemsize,
                           jnp.dtype(o_dtype).itemsize)
    out_p = _round_up(out_128, tn)
    in_p = _round_up(in_128, tk)

    w_p = jnp.pad(weight_mu,
                  ((0, out_p - out_f), (0, in_p - in_f))).astype(weight_dtype)
    b_p = jnp.pad(bias_mu, (0, out_p - out_f)).astype(jnp.float32).reshape(1, out_p)

    return dict(w=w_p, b=b_p, tn=tn, tk=tk,
                in_features=in_f, out_features=out_f,
                x_dtype=x_dtype, out_dtype=o_dtype)


# ----------------------------------------------------------------------------
# Forward
# ----------------------------------------------------------------------------
def noisy_linear_forward(x, packed):
    """x: [B, in_features] -> [B, out_features] f32.
    Matches F.linear(x, weight_mu, bias_mu) (bf16 MXU inputs, f32 accumulation)."""
    B, in_f = x.shape
    assert in_f == packed["in_features"]
    w_p, b_p = packed["w"], packed["b"]
    tn, tk = packed["tn"], packed["tk"]
    out_f = packed["out_features"]
    out_p, in_p = w_p.shape
    x_dtype, o_dtype = packed["x_dtype"], packed["out_dtype"]

    sub = 16 if x_dtype == jnp.bfloat16 else 8
    B_p = _round_up(B, sub)
    x_p = jnp.pad(x, ((0, B_p - B), (0, in_p - in_f))).astype(x_dtype)

    n_tiles = out_p // tn
    k_tiles = in_p // tk

    # Weight stream: deeper buffering only when the reduction axis is live.
    if k_tiles > 1:
        w_spec = pl.BlockSpec((tn, tk), lambda n, k: (n, k),
                              pipeline_mode=pl.Buffered(3))
    else:
        w_spec = pl.BlockSpec((tn, tk), lambda n, k: (n, k))

    # Advisory cost: W read once; x re-read once per out-strip only when K>1
    # (with tk == in_p the x block index is constant -> single DMA).
    flops = 2 * B_p * in_p * out_p
    x_reads = n_tiles if k_tiles > 1 else 1
    bytes_accessed = (out_p * in_p * jnp.dtype(w_p.dtype).itemsize
                      + x_reads * B_p * in_p * jnp.dtype(x_dtype).itemsize
                      + out_p * 4
                      + B_p * out_p * jnp.dtype(o_dtype).itemsize)

    y_p = pl.pallas_call(
        noisy_linear_kernel,
        out_shape=jax.ShapeDtypeStruct((B_p, out_p), o_dtype),
        grid_spec=pltpu.PrefetchScalarGridSpec(
            num_scalar_prefetch=0,
            grid=(n_tiles, k_tiles),                         # reduction axis last
            in_specs=[
                pl.BlockSpec((B_p, tk), lambda n, k: (0, k)),  # x
                w_spec,                                         # W, [out, in]
                pl.BlockSpec((1, tn), lambda n, k: (0, n)),     # bias
            ],
            out_specs=pl.BlockSpec((B_p, tn), lambda n, k: (0, n)),
            scratch_shapes=[pltpu.VMEM((B_p, tn), jnp.float32)],
        ),
        compiler_params=pltpu.CompilerParams(
            dimension_semantics=("parallel", "arbitrary"),
            vmem_limit_bytes=_VMEM_LIMIT_BYTES),
        cost_estimate=pl.CostEstimate(
            flops=flops, transcendentals=0, bytes_accessed=bytes_accessed),
    )(x_p, w_p, b_p)

    return y_p[:B, :out_f]


# ----------------------------------------------------------------------------
# Parameter init mirroring NoisyLinear.reset_parameters()/reset_noise()
# ----------------------------------------------------------------------------
def init_noisy_linear_params(key, in_features, out_features, sigma_init=0.5):
    """Noise buffers are created for fidelity but NOT used in forward
    (the PyTorch module's forward uses mu only)."""
    k_w, k_b, k_ein, k_eout = jax.random.split(key, 4)
    mu_range = 1.0 / math.sqrt(in_features)

    weight_mu = jax.random.uniform(
        k_w, (out_features, in_features), jnp.float32, -mu_range, mu_range)
    weight_sigma = jnp.full((out_features, in_features),
                            sigma_init / math.sqrt(in_features), jnp.float32)
    bias_mu = jax.random.uniform(
        k_b, (out_features,), jnp.float32, -mu_range, mu_range)
    bias_sigma = jnp.full((out_features,),
                          sigma_init / math.sqrt(out_features), jnp.float32)

    def scale_noise(k, size):
        v = jax.random.normal(k, (size,), jnp.float32)
        return jnp.sign(v) * jnp.sqrt(jnp.abs(v))

    eps_in = scale_noise(k_ein, in_features)
    eps_out = scale_noise(k_eout, out_features)
    weight_epsilon = jnp.outer(eps_out, eps_in)
    bias_epsilon = eps_out

    # TODO(synk): training-mode NoisyLinear (W = mu + sigma * (eps_out x eps_in))
    # would fuse the FMA per weight tile on the (idle) VPU inside the kernel,
    # streaming mu/sigma tiles and keeping the two eps vectors resident, instead
    # of materializing the noisy weight in HBM.
    return dict(weight_mu=weight_mu, weight_sigma=weight_sigma,
                bias_mu=bias_mu, bias_sigma=bias_sigma,
                weight_epsilon=weight_epsilon, bias_epsilon=bias_epsilon)


if __name__ == "__main__":
    key = jax.random.PRNGKey(0)
    k_param, k_x = jax.random.split(key)

    batch, in_features, out_features = 8, 32, 64
    params = init_noisy_linear_params(k_param, in_features, out_features)
    x = jax.random.normal(k_x, (batch, in_features), jnp.float32)

    packed = prepare_noisy_linear(params["weight_mu"], params["bias_mu"],
                                  batch_hint=batch)
    y = noisy_linear_forward(x, packed)
    y = jax.block_until_ready(y)
    assert y.shape == (batch, out_features)

    # Reference 1: same bf16 quantization of the MXU inputs, f32 math -> tight.
    x_q = x.astype(jnp.bfloat16).astype(jnp.float32)
    w_q = params["weight_mu"].astype(jnp.bfloat16).astype(jnp.float32)
    y_ref_q = jnp.dot(x_q, w_q.T,
                      precision=lax.Precision.HIGHEST) + params["bias_mu"]
    assert jnp.allclose(y, y_ref_q, atol=1e-4, rtol=1e-4)

    # Reference 2: pure f32 PyTorch semantics -> loose (bf16 weight streaming).
    y_ref = x @ params["weight_mu"].T + params["bias_mu"]
    assert jnp.allclose(y, y_ref, atol=6e-2, rtol=5e-2)

    print("KERNEL_OK")
</pallas_src>

<mosaic_0001>
module attributes {stable_mosaic.version = 11 : i64} {
  func.func @noisy_linear_kernel(%arg0: i32, %arg1: i32, %arg2: memref<16x128xbf16, #tpu.memory_space<vmem>>, %arg3: memref<128x128xbf16, #tpu.memory_space<vmem>>, %arg4: memref<1x128xf32, #tpu.memory_space<vmem>>, %arg5: memref<16x128xf32, #tpu.memory_space<vmem>>, %arg6: memref<16x128xf32, #tpu.memory_space<vmem>>) attributes {dimension_semantics = [#tpu.dimension_semantics<parallel>, #tpu.dimension_semantics<arbitrary>], iteration_bounds = array<i64: 1, 1>, scalar_prefetch = 0 : i64, scratch_operands = 1 : i64, tpu.core_type = #tpu.core_type<tc>, window_params = [{transform_indices = @transform_0, window_bounds = array<i64: 16, 128>}, {transform_indices = @transform_1, window_bounds = array<i64: 128, 128>}, {transform_indices = @transform_2, window_bounds = array<i64: 1, 128>}, {transform_indices = @transform_3, window_bounds = array<i64: 16, 128>}]} {
    %c0_i32 = arith.constant 0 : i32
    %0 = arith.cmpi eq, %arg1, %c0_i32 : i32
    %1 = arith.extui %0 : i1 to i32
    %c0_i32_0 = arith.constant 0 : i32
    %2 = arith.cmpi ne, %1, %c0_i32_0 : i32
    scf.if %2 {
      %c0_10 = arith.constant 0 : index
      %c0_11 = arith.constant 0 : index
      %12 = vector.load %arg4[%c0_10, %c0_11] : memref<1x128xf32, #tpu.memory_space<vmem>>, vector<1x128xf32>
      %13 = vector.shape_cast %12 : vector<1x128xf32> to vector<1x128xf32>
      %14 = vector.broadcast %13 : vector<1x128xf32> to vector<16x128xf32>
      %c0_12 = arith.constant 0 : index
      %c0_13 = arith.constant 0 : index
      %15 = vector.load %arg6[%c0_12, %c0_13] : memref<16x128xf32, #tpu.memory_space<vmem>>, vector<16x128xf32>
      tpu.vector_store %arg6[%c0_12, %c0_13], %14 {strides = array<i32>} : memref<16x128xf32, #tpu.memory_space<vmem>>, vector<16x128xf32>,
    } else {
    }
    %c0 = arith.constant 0 : index
    %c0_1 = arith.constant 0 : index
    %3 = vector.load %arg6[%c0, %c0_1] : memref<16x128xf32, #tpu.memory_space<vmem>>, vector<16x128xf32>
    %c0_2 = arith.constant 0 : index
    %c0_3 = arith.constant 0 : index
    %4 = vector.load %arg2[%c0_2, %c0_3] : memref<16x128xbf16, #tpu.memory_space<vmem>>, vector<16x128xbf16>
    %c0_4 = arith.constant 0 : index
    %c0_5 = arith.constant 0 : index
    %5 = vector.load %arg3[%c0_4, %c0_5] : memref<128x128xbf16, #tpu.memory_space<vmem>>, vector<128x128xbf16>
    %cst = arith.constant dense<0.000000e+00> : vector<16x128xf32>
    %6 = tpu.matmul %4, %5, %cst {dimension_numbers = #tpu.dot_dimension_numbers<[1], [1], [0], [0], [0, 0, 1, 0], [], []>} : vector<16x128xbf16>, vector<128x128xbf16>, vector<16x128xf32> -> vector<16x128xf32>
    %7 = arith.addf %3, %6 : vector<16x128xf32>
    %c0_6 = arith.constant 0 : index
    %c0_7 = arith.constant 0 : index
    %8 = vector.load %arg6[%c0_6, %c0_7] : memref<16x128xf32, #tpu.memory_space<vmem>>, vector<16x128xf32>
    tpu.vector_store %arg6[%c0_6, %c0_7], %7 {strides = array<i32>} : memref<16x128xf32, #tpu.memory_space<vmem>>, vector<16x128xf32>,
    %c0_i32_8 = arith.constant 0 : i32
    %9 = arith.cmpi eq, %arg1, %c0_i32_8 : i32
    %10 = arith.extui %9 : i1 to i32
    %c0_i32_9 = arith.constant 0 : i32
    %11 = arith.cmpi ne, %10, %c0_i32_9 : i32
    scf.if %11 {
      %c0_10 = arith.constant 0 : index
      %c0_11 = arith.constant 0 : index
      %12 = vector.load %arg6[%c0_10, %c0_11] : memref<16x128xf32, #tpu.memory_space<vmem>>, vector<16x128xf32>
      %c0_12 = arith.constant 0 : index
      %c0_13 = arith.constant 0 : index
      %13 = vector.load %arg5[%c0_12, %c0_13] : memref<16x128xf32, #tpu.memory_space<vmem>>, vector<16x128xf32>
      tpu.vector_store %arg5[%c0_12, %c0_13], %12 {strides = array<i32>} : memref<16x128xf32, #tpu.memory_space<vmem>>, vector<16x128xf32>,
    } else {
    }
    return
  }
  func.func @transform_0(%arg0: i32, %arg1: i32) -> (i32, i32) {
    %c0_i32 = arith.constant 0 : i32
    %c0_i32_0 = arith.constant 0 : i32
    return %c0_i32, %arg1 : i32, i32
  }
  func.func @transform_1(%arg0: i32, %arg1: i32) -> (i32, i32) {
    %c0_i32 = arith.constant 0 : i32
    return %arg0, %arg1 : i32, i32
  }
  func.func @transform_2(%arg0: i32, %arg1: i32) -> (i32, i32) {
    %c0_i32 = arith.constant 0 : i32
    %c0_i32_0 = arith.constant 0 : i32
    return %c0_i32, %arg0 : i32, i32
  }
  func.func @transform_3(%arg0: i32, %arg1: i32) -> (i32, i32) {
    %c0_i32 = arith.constant 0 : i32
    %c0_i32_0 = arith.constant 0 : i32
    return %c0_i32, %arg0 : i32, i32
  }
}

</mosaic_0001>

<llo_original>
// kernel: tpu_custom_call.1
$region0: #{tpu_custom_call.1}
  #allocation0 [shape = 'u32[]', space=smem, size = 0x4, offset = 0x4, fixed_abs, tag = 'smem constant byte address 0x4 - core index']
  #allocation1 [shape = 'u32[72,128]{1,0:T(1,128)}', space=vmem, size = 0x9000, scoped, tag = 'internal scratch']
  #allocation2 [shape = 'f32[16,128]{1,0:T(8,128)}', space=vmem, size = 0x2000, scoped, tag = 'scratch operand']
  %s0 = inlined_call_operand.hbm [shape: bf16[16,128], index: 0, kind: input, shape index: {}]
  %s1 = inlined_call_operand.hbm [shape: bf16[128,128], index: 1, kind: input, shape index: {}]
  %s2 = inlined_call_operand.vmem [shape: f32[1,128], index: 2, kind: input, shape index: {}]
  %s3 = inlined_call_operand.hbm [shape: f32[16,128], index: 3, kind: output, shape index: {}]
  %s4 = sld [smem:[#allocation0]]
  $region38: #{tpu_custom_call.1} parent=0
    _
  %s6 = ssub.s32 1, %s4
  %s7 = scalar_select 0, %s6, %s4
  $region1: #{tpu_custom_call.1} parent=0
    #allocation3 [shape = 'u8[4096]{0}', space=vmem, size = 0x1000, scoped, tag = 'input window, operand 0, single buffered']
    #allocation4 [shape = 's32[1]{0}', space=sflag, size = 0x4, scoped, tag = 'scoped memory for tpu_custom_call.1']
    #allocation5 [shape = 's32[1]{0}', space=sflag, size = 0x4, scoped, tag = 'scoped memory for tpu_custom_call.1']
    #allocation6 [shape = 'u8[32768]{0}', space=vmem, size = 0x8000, scoped, tag = 'input window, operand 1, single buffered']
    #allocation7 [shape = 's32[1]{0}', space=sflag, size = 0x4, scoped, tag = 'scoped memory for tpu_custom_call.1']
    #allocation8 [shape = 'u8[8192]{0}', space=vmem, size = 0x2000, scoped, tag = 'output window, operand 0, single buffered']
    %8 = vsyncpa [#allocation4], 0
    %9 = vsyncpa [#allocation7], 0
    %10 = vsyncpa [#allocation5], 0
    // Predicated region
    $region2: #{tpu_custom_call.1} parent=1 // pred_check
      _
    $region3: #{tpu_custom_call.1} parent=1 // pred_check_branch
      %12 = sbr.rel (0) target = $region5
    $region4: #{tpu_custom_call.1} parent=1 // pred_region
      %14 = vsyncadd [#allocation4], 0
      %s15 = sshll.u32 %s0, 4
      %s16 = int_to_ptr.hbm [resolvable:$true] %s15
      %s17 = sshll.u32 [#allocation3], 4
      %s18 = int_to_ptr.vmem [resolvable:$true] %s17
      %23 = dma.hbm_to_vmem [thread:$0]  %s16, 128, %s18, [#allocation4], 64, 64, 4
    $region5: #{tpu_custom_call.1} parent=1 // pred_fallthru
      _
    // Predicated region
    $region6: #{tpu_custom_call.1} parent=1 // pred_check
      _
    $region7: #{tpu_custom_call.1} parent=1 // pred_check_branch
      %25 = sbr.rel (0) target = $region9
    $region8: #{tpu_custom_call.1} parent=1 // pred_region
      %27 = vsyncadd [#allocation7], 0
      %s28 = sshll.u32 %s1, 4
      %s29 = int_to_ptr.hbm [resolvable:$true] %s28
      %s30 = sshll.u32 [#allocation6], 4
      %s31 = int_to_ptr.vmem [resolvable:$true] %s30
      %36 = dma.hbm_to_vmem [thread:$0]  %s29, 1024, %s31, [#allocation7], 64, 64, 4
    $region9: #{tpu_custom_call.1} parent=1 // pred_fallthru
      _
    // Predicated region
    $region10: #{tpu_custom_call.1} parent=1 // pred_check
      _
    $region11: #{tpu_custom_call.1} parent=1 // pred_check_branch
      %38 = sbr.rel (0) target = $region13
    $region12: #{tpu_custom_call.1} parent=1 // pred_region
      _
    $region13: #{tpu_custom_call.1} parent=1 // pred_fallthru
      _
    // Predicated region
    $region14: #{tpu_custom_call.1} parent=1 // pred_check
      _
    $region15: #{tpu_custom_call.1} parent=1 // pred_check_branch
      %40 = sbr.rel (0) target = $region17
    $region16: #{tpu_custom_call.1} parent=1 // pred_region
      %42 = dma.done [#allocation4], 128
    $region17: #{tpu_custom_call.1} parent=1 // pred_fallthru
      _
    // Predicated region
    $region18: #{tpu_custom_call.1} parent=1 // pred_check
      _
    $region19: #{tpu_custom_call.1} parent=1 // pred_check_branch
      %44 = sbr.rel (0) target = $region21
    $region20: #{tpu_custom_call.1} parent=1 // pred_region
      %46 = dma.done [#allocation7], 1024
    $region21: #{tpu_custom_call.1} parent=1 // pred_fallthru
      _
    %p47 = scmp.eq.s32.totalorder 0, 0
    // Predicated region
    $region22: #{tpu_custom_call.1} parent=1 // pred_check
      %p48 = pneg %p47
    $region23: #{tpu_custom_call.1} parent=1 // pred_check_branch
      %50 = sbr.rel (%p48) target = $region25
    $region24: #{tpu_custom_call.1} parent=1 // pred_region
      %v51 = vld [vmem:[%s2] sm:$0x1]
      %v53 = vperm.slane %v51, 0
      %55 = vst [vmem:[#allocation2] sm:$0xff] %v53
      %56 = vst [vmem:[#allocation2 + $0x8] sm:$0xff] %v53
    $region25: #{tpu_custom_call.1} parent=1 // pred_fallthru
      _
    %v57 = vld [vmem:[#allocation2] sm:$0xff]
    %v58 = vld [vmem:[#allocation2 + $0x8] sm:$0xff]
    %v59 = vld [vmem:[#allocation3] sm:$0xf]
    %v60 = vld [vmem:[#allocation3 + $0x4] sm:$0xf]
    %v61 = vld [vmem:[#allocation6] sm:$0xf]
    %v62 = vld [vmem:[#allocation6 + $0x4] sm:$0xf]
    %v63 = vld [vmem:[#allocation6 + $0x8] sm:$0xf]
    %v64 = vld [vmem:[#allocation6 + $0xc] sm:$0xf]
    %v65 = vld [vmem:[#allocation6 + $0x10] sm:$0xf]
    %v66 = vld [vmem:[#allocation6 + $0x14] sm:$0xf]
    %v67 = vld [vmem:[#allocation6 + $0x18] sm:$0xf]
    %v68 = vld [vmem:[#allocation6 + $0x1c] sm:$0xf]
    %v69 = vld [vmem:[#allocation6 + $0x20] sm:$0xf]
    %v70 = vld [vmem:[#allocation6 + $0x24] sm:$0xf]
    %v71 = vld [vmem:[#allocation6 + $0x28] sm:$0xf]
    %v72 = vld [vmem:[#allocation6 + $0x2c] sm:$0xf]
    %v73 = vld [vmem:[#allocation6 + $0x30] sm:$0xf]
    %v74 = vld [vmem:[#allocation6 + $0x34] sm:$0xf]
    %v75 = vld [vmem:[#allocation6 + $0x38] sm:$0xf]
    %v76 = vld [vmem:[#allocation6 + $0x3c] sm:$0xf]
    %v79 = vunpack.c.l.b16 %v59
    %v80 = vunpack.c.l.b16 %v60
    %v81 = vpack.c.b16 %v80, %v79
    %v99 = vunpack.c.l.b16 %v61
    %v100 = vunpack.c.l.b16 %v62
    %v101 = vunpack.c.l.b16 %v63
    %v102 = vunpack.c.l.b16 %v64
    %v103 = vunpack.c.l.b16 %v65
    %v104 = vunpack.c.l.b16 %v66
    %v105 = vunpack.c.l.b16 %v67
    %v106 = vunpack.c.l.b16 %v68
    %v107 = vunpack.c.l.b16 %v69
    %v108 = vunpack.c.l.b16 %v70
    %v109 = vunpack.c.l.b16 %v71
    %v110 = vunpack.c.l.b16 %v72
    %v111 = vunpack.c.l.b16 %v73
    %v112 = vunpack.c.l.b16 %v74
    %v113 = vunpack.c.l.b16 %v75
    %v114 = vunpack.c.l.b16 %v76
    %v115 = vpack.c.b16 %v100, %v99
    %v116 = vpack.c.b16 %v102, %v101
    %v117 = vpack.c.b16 %v104, %v103
    %v118 = vpack.c.b16 %v106, %v105
    %v119 = vpack.c.b16 %v108, %v107
    %v120 = vpack.c.b16 %v110, %v109
    %v121 = vpack.c.b16 %v112, %v111
    %v122 = vpack.c.b16 %v114, %v113
    %131 = vmatpush.bf16.xpose.msra.mxu0 %v122
    %132 = vmatpush.bf16.xpose.msra.mxu0 %v121
    %133 = vmatpush.bf16.xpose.msra.mxu0 %v120
    %134 = vmatpush.bf16.xpose.msra.mxu0 %v119
    %135 = vmatpush.bf16.xpose.msra.mxu0 %v118
    %136 = vmatpush.bf16.xpose.msra.mxu0 %v117
    %137 = vmatpush.bf16.xpose.msra.mxu0 %v116
    %138 = vmatpush.bf16.xpose.msra.mxu0 %v115
    %139 = vmatmul.bf16.gmra.mxu0 %v81
    %v140 = vpop.f32.mrf.mxu0
    %v141 = vadd.f32 0.0, %v140
    %v142 = vpop.f32.mrf.mxu0
    %v143 = vadd.f32 0.0, %v142
    %144 = vdwg.mxu0
    %v145 = vadd.f32 %v57, %v141
    %v146 = vadd.f32 %v58, %v143
    %147 = vst [vmem:[#allocation2] sm:$0xff] %v145
    %148 = vst [vmem:[#allocation2 + $0x8] sm:$0xff] %v146
    // Predicated region
    $region26: #{tpu_custom_call.1} parent=1 // pred_check
      %p149 = pneg %p47
    $region27: #{tpu_custom_call.1} parent=1 // pred_check_branch
      %151 = sbr.rel (%p149) target = $region29
    $region28: #{tpu_custom_call.1} parent=1 // pred_region
      %v152 = vld [vmem:[#allocation2] sm:$0xff]
      %v153 = vld [vmem:[#allocation2 + $0x8] sm:$0xff]
      %154 = vst [vmem:[#allocation8] sm:$0xff] %v152
      %155 = vst [vmem:[#allocation8 + $0x8] sm:$0xff] %v153
    $region29: #{tpu_custom_call.1} parent=1 // pred_fallthru
      _
    // Predicated region
    $region30: #{tpu_custom_call.1} parent=1 // pred_check
      _
    $region31: #{tpu_custom_call.1} parent=1 // pred_check_branch
      %157 = sbr.rel (0) target = $region33
    $region32: #{tpu_custom_call.1} parent=1 // pred_region
      %159 = vsyncadd [#allocation5], 0
      %s160 = sshll.u32 [#allocation8], 4
      %s161 = int_to_ptr.vmem [resolvable:$true] %s160
      %s162 = sshll.u32 %s3, 4
      %s163 = int_to_ptr.hbm [resolvable:$true] %s162
      %168 = dma.vmem_to_hbm [thread:$0]  %s161, 256, %s163, [#allocation5], 128, 128, 8
    $region33: #{tpu_custom_call.1} parent=1 // pred_fallthru
      _
    // Predicated region
    $region34: #{tpu_custom_call.1} parent=1 // pred_check
      _
    $region35: #{tpu_custom_call.1} parent=1 // pred_check_branch
      %170 = sbr.rel (0) target = $region37
    $region36: #{tpu_custom_call.1} parent=1 // pred_region
      %172 = dma.done [#allocation5], 256
    $region37: #{tpu_custom_call.1} parent=1 // pred_fallthru
      _
    %173 = vsyncpa [#allocation4], 1
    %174 = vsyncpa [#allocation7], 1
    %175 = vsyncpa [#allocation5], 1

</llo_original>
